<compile_context>
chip_gen: v6e
topology: v6e:2x2x1
jax: 0.10.0
libtpu: 0.0.40
codegen_flags: <defaults>
</compile_context>

<pallas_src>
import functools

import jax
import jax.numpy as jnp
from jax.experimental import pallas as pl
from jax.experimental.pallas import tpu as pltpu

_VMEM_LIMIT = 32 * 1024 * 1024          # fits v5e/v6e (128 MiB) and v7x (64 MiB) VMEM
_TM = 256                               # output-row tile (safe on all generations)


def _ceil_to(x, m):
    return ((x + m - 1) // m) * m


def _pad_to(x, rows, cols):
    r, c = x.shape
    if r == rows and c == cols:
        return x                        # no-op: avoid a redundant HBM copy
    return jnp.pad(x, ((0, rows - r), (0, cols - c)))


# ----------------------------- GEMM tiling plan ------------------------------

def _tile_plan(M, K, N):
    """Return (tm, tn, tk, Mp, Np, Kp); pad only when unavoidable."""
    if M <= _TM:
        tm, Mp = M, M
    else:
        tm, Mp = _TM, _ceil_to(M, _TM)
    if N <= 512:
        tn, Np = N, N                   # full-dim block (legal for any N)
    elif N % 512 == 0:
        tn, Np = 512, N                 # wide convs: halves A re-reads
    elif N % 256 == 0:
        tn, Np = 256, N
    else:
        tn, Np = 256, _ceil_to(N, 256)  # only the fc (N=1000) hits this
    if K <= 1152:                       # covers 147 / 576 / 1024 / 1152: one K step
        tk, Kp = K, K
    elif K % 512 == 0:
        tk, Kp = 512, K
    elif K % 256 == 0:
        tk, Kp = 256, K                 # e.g. K = 2304 (layer3 3x3), no padding
    else:
        tk, Kp = 512, _ceil_to(K, 512)
    return tm, tn, tk, Mp, Np, Kp


# ----------------------------- matmul kernels --------------------------------

def _mm_stats_kernel(a_ref, b_ref, o_ref, sum_ref, ssq_ref):
    """bf16 GEMM, f32 resident accumulation; per-tile column sum / sum-of-squares
    (BatchNorm batch statistics) fused into the last-K epilogue."""
    @pl.when(pl.program_id(2) == 0)
    def _():
        o_ref[...] = jnp.zeros_like(o_ref)

    o_ref[...] += jnp.dot(a_ref[...], b_ref[...],
                          preferred_element_type=jnp.float32)

    @pl.when(pl.program_id(2) == pl.num_programs(2) - 1)
    def _():
        y = o_ref[...]
        s = jnp.sum(y, axis=0, keepdims=True)            # (1, tn)
        q = jnp.sum(y * y, axis=0, keepdims=True)        # (1, tn)
        sum_ref[...] = jnp.reshape(s, (1, 1, s.shape[-1]))
        ssq_ref[...] = jnp.reshape(q, (1, 1, q.shape[-1]))


def _mm_bias_kernel(a_ref, b_ref, bias_ref, o_ref, *, relu):
    """bf16 GEMM with bias (+ optional ReLU) fused into the last-K epilogue."""
    @pl.when(pl.program_id(2) == 0)
    def _():
        o_ref[...] = jnp.zeros_like(o_ref)

    o_ref[...] += jnp.dot(a_ref[...], b_ref[...],
                          preferred_element_type=jnp.float32)

    @pl.when(pl.program_id(2) == pl.num_programs(2) - 1)
    def _():
        y = o_ref[...] + bias_ref[...]
        if relu:
            y = jnp.maximum(y, 0.0)
        o_ref[...] = y


def conv_gemm_with_stats(a, b):
    """[M,K] @ [K,N] -> (row-padded f32 product, per-row-tile col sums, col ssq).

    Padded rows of the product are exact zeros (zero-padded A), so the fused batch
    statistics are unaffected; the tiny (grid_m, 1, N) stat tiles are reduced in JAX.
    """
    M, K = a.shape
    K2, N = b.shape
    assert K == K2
    a = a.astype(jnp.bfloat16)
    b = b.astype(jnp.bfloat16)
    tm, tn, tk, Mp, Np, Kp = _tile_plan(M, K, N)
    a_p = _pad_to(a, Mp, Kp)
    b_p = _pad_to(b, Kp, Np)
    gm = Mp // tm
    grid = (gm, Np // tn, Kp // tk)
    y, tsum, tssq = pl.pallas_call(
        _mm_stats_kernel,
        out_shape=(jax.ShapeDtypeStruct((Mp, Np), jnp.float32),
                   jax.ShapeDtypeStruct((gm, 1, Np), jnp.float32),
                   jax.ShapeDtypeStruct((gm, 1, Np), jnp.float32)),
        grid=grid,
        in_specs=[pl.BlockSpec((tm, tk), lambda i, j, k: (i, k)),
                  pl.BlockSpec((tk, tn), lambda i, j, k: (k, j))],
        out_specs=(pl.BlockSpec((tm, tn), lambda i, j, k: (i, j)),
                   pl.BlockSpec((1, 1, tn), lambda i, j, k: (i, 0, j)),
                   pl.BlockSpec((1, 1, tn), lambda i, j, k: (i, 0, j))),
        compiler_params=pltpu.CompilerParams(
            dimension_semantics=("parallel", "parallel", "arbitrary"),
            vmem_limit_bytes=_VMEM_LIMIT),
    )(a_p, b_p)
    return y, tsum, tssq


def pallas_matmul_bias(a, b, bias, relu=False):
    """[M,K] @ [K,N] + bias (+ReLU) for the two FC head layers."""
    M, K = a.shape
    K2, N = b.shape
    assert K == K2
    a = a.astype(jnp.bfloat16)
    b = b.astype(jnp.bfloat16)
    tm, tn, tk, Mp, Np, Kp = _tile_plan(M, K, N)
    a_p = _pad_to(a, Mp, Kp)
    b_p = _pad_to(b, Kp, Np)
    bias_p = _pad_to(bias.astype(jnp.float32), 1, Np)
    grid = (Mp // tm, Np // tn, Kp // tk)
    out = pl.pallas_call(
        functools.partial(_mm_bias_kernel, relu=relu),
        out_shape=jax.ShapeDtypeStruct((Mp, Np), jnp.float32),
        grid=grid,
        in_specs=[pl.BlockSpec((tm, tk), lambda i, j, k: (i, k)),
                  pl.BlockSpec((tk, tn), lambda i, j, k: (k, j)),
                  pl.BlockSpec((1, tn), lambda i, j, k: (0, j))],
        out_specs=pl.BlockSpec((tm, tn), lambda i, j, k: (i, j)),
        compiler_params=pltpu.CompilerParams(
            dimension_semantics=("parallel", "parallel", "arbitrary"),
            vmem_limit_bytes=_VMEM_LIMIT),
    )(a_p, b_p, bias_p)
    if (Mp, Np) != (M, N):
        out = out[:M, :N]               # tiny (batch-row) slice, FC head only
    return out


# ---------------------------- batch-norm apply --------------------------------

def _pick_rows(M, row_bytes, target=4 << 20):
    """Largest multiple-of-8 divisor of M whose block stays under ~4 MiB total.
    Callers only pass M that is <=256 or a multiple of 256/128, so the whole-array
    fallback is only reached for small arrays (no VMEM risk)."""
    if M * row_bytes <= target:
        return M
    max_rows = max(8, target // row_bytes)
    r = int(min(M, max_rows))
    r -= r % 8
    while r >= 8:
        if M % r == 0:
            return r
        r -= 8
    return M


def _bn_apply_kernel(x_ref, s_ref, t_ref, o_ref, *, relu):
    y = x_ref[...] * s_ref[...] + t_ref[...]
    if relu:
        y = jnp.maximum(y, 0.0)
    o_ref[...] = y.astype(o_ref.dtype)


def _bn_apply_add_relu_kernel(x_ref, s_ref, t_ref, r_ref, o_ref):
    y = x_ref[...] * s_ref[...] + t_ref[...] + r_ref[...].astype(jnp.float32)
    o_ref[...] = jnp.maximum(y, 0.0).astype(o_ref.dtype)


def pallas_bn_apply(y, scale, shift, residual=None, relu=True,
                    out_dtype=jnp.bfloat16):
    """Fused scale*x+shift [+ residual] [+ ReLU], row-tiled, bf16 output."""
    M, C = y.shape
    factor = 1
    # Lane-dense repack for narrow channel counts (C=64 stem / layer1 convs):
    if C < 128 and 128 % C == 0 and M % (128 // C) == 0:
        factor = 128 // C
        y = y.reshape(M // factor, C * factor)
        if residual is not None:
            residual = residual.reshape(M // factor, C * factor)
        scale = jnp.tile(scale, (1, factor))
        shift = jnp.tile(shift, (1, factor))
    Mr, Cr = y.shape
    row_bytes = Cr * (4 + 2 + (2 if residual is not None else 0))
    rt = _pick_rows(Mr, row_bytes)
    row_spec = pl.BlockSpec((rt, Cr), lambda i: (i, 0))
    vec_spec = pl.BlockSpec((1, Cr), lambda i: (0, 0))
    if residual is not None:
        kernel = _bn_apply_add_relu_kernel
        in_specs = [row_spec, vec_spec, vec_spec, row_spec]
        args = (y, scale, shift, residual)
    else:
        kernel = functools.partial(_bn_apply_kernel, relu=relu)
        in_specs = [row_spec, vec_spec, vec_spec]
        args = (y, scale, shift)
    out = pl.pallas_call(
        kernel,
        out_shape=jax.ShapeDtypeStruct((Mr, Cr), out_dtype),
        grid=(Mr // rt,),
        in_specs=in_specs,
        out_specs=row_spec,
        compiler_params=pltpu.CompilerParams(
            dimension_semantics=("parallel",),
            vmem_limit_bytes=_VMEM_LIMIT),
    )(*args)
    if factor != 1:
        out = out.reshape(M, C)
    return out


# ------------------------------ pooling kernels --------------------------------

def _gap_kernel(x_ref, o_ref, *, inv_hw):
    s = jnp.sum(x_ref[...].astype(jnp.float32), axis=1) * inv_hw   # (1, C)
    o_ref[...] = s[:, None, :]                                      # (1, 1, C)


def global_avg_pool(x):
    """NHWC -> [N, C] spatial mean; one lane-dense (1,1,C) block per batch row."""
    N, H, W, C = x.shape
    HW = H * W
    xr = x.reshape(N, HW, C)
    out = pl.pallas_call(
        functools.partial(_gap_kernel, inv_hw=1.0 / HW),
        out_shape=jax.ShapeDtypeStruct((N, 1, C), jnp.float32),
        grid=(N,),
        in_specs=[pl.BlockSpec((1, HW, C), lambda n: (n, 0, 0))],
        out_specs=pl.BlockSpec((1, 1, C), lambda n: (n, 0, 0)),
        compiler_params=pltpu.CompilerParams(
            dimension_semantics=("parallel",),
            vmem_limit_bytes=_VMEM_LIMIT),
    )(xr)
    return out.reshape(N, C)


def maxpool_3x3_s2_p1(x):
    """3x3 stride-2 pad-1 max-pool as a fused tree of strided maxima (no 9x stack)."""
    N, H, W, C = x.shape
    xp = jnp.pad(x, ((0, 0), (1, 1), (1, 1), (0, 0)), constant_values=-jnp.inf)
    OH = (H + 2 - 3) // 2 + 1
    OW = (W + 2 - 3) // 2 + 1
    out = None
    for i in range(3):
        for j in range(3):
            sl = jax.lax.slice(
                xp, (0, i, j, 0),
                (N, i + 2 * (OH - 1) + 1, j + 2 * (OW - 1) + 1, C),
                (1, 2, 2, 1))
            out = sl if out is None else jnp.maximum(out, sl)
    return out


# ------------------------------ JAX glue ---------------------------------------

def _im2col(x, kh, kw, stride, pad):
    """x: NHWC (bf16) -> patches [N*OH*OW, kh*kw*C] (tap order: (kh, kw, C))."""
    # TODO(synk): taps are still materialized (kh*kw copies, bf16); implicit GEMM
    # (tap axis folded into the K grid with halo windows) would remove this traffic.
    N, H, W, C = x.shape
    xp = jnp.pad(x, ((0, 0), (pad, pad), (pad, pad), (0, 0))) if pad else x
    Hp, Wp = H + 2 * pad, W + 2 * pad
    OH = (Hp - kh) // stride + 1
    OW = (Wp - kw) // stride + 1
    cols = []
    for i in range(kh):
        for j in range(kw):
            sl = jax.lax.slice(
                xp, (0, i, j, 0),
                (N, i + stride * (OH - 1) + 1, j + stride * (OW - 1) + 1, C),
                (1, stride, stride, 1))
            cols.append(sl)
    patches = cols[0] if len(cols) == 1 else jnp.concatenate(cols, axis=-1)
    return patches.reshape(N * OH * OW, kh * kw * C), (N, OH, OW)


def conv_bn(x, w, gamma, beta, kh, kw, stride, pad, relu=True, residual=None):
    """conv (im2col GEMM, fused batch stats) -> BN -> [residual add] -> [ReLU]."""
    patches, (N, OH, OW) = _im2col(x, kh, kw, stride, pad)
    M = N * OH * OW
    C = w.shape[1]
    y, tsum, tssq = conv_gemm_with_stats(patches, w)     # y: (Mp, C) f32 (row-padded)
    if y.shape[1] != C:                                  # not hit for ResNet-50 Couts
        y, tsum, tssq = y[:, :C], tsum[..., :C], tssq[..., :C]
    sums = jnp.sum(tsum, axis=0)                         # (1, C)
    ssqs = jnp.sum(tssq, axis=0)                         # (1, C)
    # Training-mode BatchNorm: batch statistics, biased variance (torch default
    # forward). TODO(synk): running_mean/var bookkeeping not modeled (no output effect).
    mean = sums / M
    var = jnp.maximum(ssqs / M - mean * mean, 0.0)
    inv = jax.lax.rsqrt(var + 1e-5)
    scale = gamma * inv
    shift = beta - mean * scale
    Mp = y.shape[0]
    if residual is not None and Mp != M:
        residual = jnp.pad(residual, ((0, Mp - M), (0, 0)))   # bf16, pad rows only
    out = pallas_bn_apply(y, scale, shift, residual=residual, relu=relu)
    if Mp != M:
        out = out[:M]                                    # single bf16 crop
    return out.reshape(N, OH, OW, C)


def bottleneck(x, p):
    s = p['stride']
    out = conv_bn(x, p['w1'], p['g1'], p['b1'], 1, 1, 1, 0, relu=True)
    out = conv_bn(out, p['w2'], p['g2'], p['b2'], 3, 3, s, 1, relu=True)
    if 'wd' in p:
        identity = conv_bn(x, p['wd'], p['gd'], p['bd'], 1, 1, s, 0, relu=False)
    else:
        identity = x
    C = p['w3'].shape[1]
    # BN + residual add + ReLU of the last conv are fused into one Pallas pass.
    out = conv_bn(out, p['w3'], p['g3'], p['b3'], 1, 1, 1, 0,
                  relu=True, residual=identity.reshape(-1, C))
    return out


# --------------------------- parameter init ------------------------------------

class _KeyGen:
    def __init__(self, seed):
        self._key = jax.random.PRNGKey(seed)

    def __call__(self):
        self._key, sub = jax.random.split(self._key)
        return sub


def _conv_w(kg, kh, kw, cin, cout):
    fan_in = kh * kw * cin
    w = jax.random.normal(kg(), (fan_in, cout), jnp.float32) * (2.0 / fan_in) ** 0.5
    return w.astype(jnp.bfloat16)


def _ones(c):
    return jnp.ones((1, c), jnp.float32)


def _zeros(c):
    return jnp.zeros((1, c), jnp.float32)


def init_params(seed=0):
    kg = _KeyGen(seed)
    params = {
        'stem_w': _conv_w(kg, 7, 7, 3, 64),
        'stem_g': _ones(64), 'stem_b': _zeros(64),
    }
    layers = []
    in_c = 64
    for planes, nblocks, stride in [(64, 3, 1), (128, 4, 2), (256, 6, 2), (512, 3, 2)]:
        blocks = []
        for bi in range(nblocks):
            s = stride if bi == 0 else 1
            blk = {
                'stride': s,
                'w1': _conv_w(kg, 1, 1, in_c, planes),
                'g1': _ones(planes), 'b1': _zeros(planes),
                'w2': _conv_w(kg, 3, 3, planes, planes),
                'g2': _ones(planes), 'b2': _zeros(planes),
                'w3': _conv_w(kg, 1, 1, planes, planes * 4),
                'g3': _ones(planes * 4), 'b3': _zeros(planes * 4),
            }
            if s != 1 or in_c != planes * 4:
                blk['wd'] = _conv_w(kg, 1, 1, in_c, planes * 4)
                blk['gd'] = _ones(planes * 4)
                blk['bd'] = _zeros(planes * 4)
            blocks.append(blk)
            in_c = planes * 4
        layers.append(blocks)
    params['layers'] = layers
    params['fc_w'] = (jax.random.normal(kg(), (2048, 1000), jnp.float32)
                      * (1.0 / 2048) ** 0.5).astype(jnp.bfloat16)
    params['fc_b'] = _zeros(1000)
    params['lin_w'] = (jax.random.normal(kg(), (1000, 1), jnp.float32)
                       * (1.0 / 1000) ** 0.5).astype(jnp.bfloat16)
    params['lin_b'] = _zeros(1)
    return params


# ------------------------------- forward ----------------------------------------

def resnet_forward(params, x_nchw, g=None):
    """Equivalent of resnet.forward(x, g): resnet50(x) -> Linear(1000,1) -> ReLU
    -> unsqueeze(1). `g` is accepted (as in the PyTorch signature) but unused."""
    x = jnp.transpose(x_nchw, (0, 2, 3, 1)).astype(jnp.bfloat16)    # NCHW -> NHWC bf16
    # stem
    x = conv_bn(x, params['stem_w'], params['stem_g'], params['stem_b'],
                7, 7, 2, 3, relu=True)
    x = maxpool_3x3_s2_p1(x)
    # residual stages
    for blocks in params['layers']:
        for blk in blocks:
            x = bottleneck(x, blk)
    # head (bias + ReLU fused into the GEMM epilogue)
    feat = global_avg_pool(x)                                       # [N, 2048]
    out = pallas_matmul_bias(feat, params['fc_w'], params['fc_b'],
                             relu=False)                            # resnet50.fc
    out = pallas_matmul_bias(out, params['lin_w'], params['lin_b'],
                             relu=True)                             # Linear(1000,1)+ReLU
    return out[:, None, :]                                          # [N, 1, 1]


if __name__ == "__main__":
    params = init_params(seed=0)
    key = jax.random.PRNGKey(0)
    kx, kgarg = jax.random.split(key)
    x = jax.random.normal(kx, (2, 3, 32, 32), jnp.float32)   # small NCHW image batch
    g = jax.random.normal(kgarg, (2,), jnp.float32)          # unused by forward (as in torch)
    out = resnet_forward(params, x, g)
    out = jax.block_until_ready(out)
    assert out.shape == (2, 1, 1), out.shape
    assert bool(jnp.all(jnp.isfinite(out.astype(jnp.float32))))
    print("KERNEL_OK")
</pallas_src>

<mosaic_0001>
module attributes {stable_mosaic.version = 11 : i64} {
  func.func @_mm_stats_kernel(%arg0: i32, %arg1: i32, %arg2: i32, %arg3: memref<256x147xbf16, #tpu.memory_space<vmem>>, %arg4: memref<147x64xbf16, #tpu.memory_space<vmem>>, %arg5: memref<256x64xf32, #tpu.memory_space<vmem>>, %arg6: memref<1x1x64xf32, #tpu.memory_space<vmem>>, %arg7: memref<1x1x64xf32, #tpu.memory_space<vmem>>) attributes {dimension_semantics = [#tpu.dimension_semantics<parallel>, #tpu.dimension_semantics<parallel>, #tpu.dimension_semantics<arbitrary>], iteration_bounds = array<i64: 2, 1, 1>, scalar_prefetch = 0 : i64, scratch_operands = 0 : i64, tpu.core_type = #tpu.core_type<tc>, window_params = [{transform_indices = @transform_0, window_bounds = array<i64: 256, 147>}, {transform_indices = @transform_1, window_bounds = array<i64: 147, 64>}, {transform_indices = @transform_2, window_bounds = array<i64: 256, 64>}, {transform_indices = @transform_3, window_bounds = array<i64: 1, 1, 64>}, {transform_indices = @transform_4, window_bounds = array<i64: 1, 1, 64>}]} {
    %c0_i32 = arith.constant 0 : i32
    %0 = arith.cmpi eq, %arg2, %c0_i32 : i32
    %1 = arith.extui %0 : i1 to i32
    %c0_i32_0 = arith.constant 0 : i32
    %2 = arith.cmpi ne, %1, %c0_i32_0 : i32
    scf.if %2 {
      %cst_10 = arith.constant 0.000000e+00 : f32
      %12 = vector.broadcast %cst_10 : f32 to vector<256x64xf32>
      %c0_11 = arith.constant 0 : index
      %c0_12 = arith.constant 0 : index
      %13 = vector.load %arg5[%c0_11, %c0_12] : memref<256x64xf32, #tpu.memory_space<vmem>>, vector<256x64xf32>
      tpu.vector_store %arg5[%c0_11, %c0_12], %12 {strides = array<i32>} : memref<256x64xf32, #tpu.memory_space<vmem>>, vector<256x64xf32>,
    } else {
    }
    %c0 = arith.constant 0 : index
    %c0_1 = arith.constant 0 : index
    %3 = vector.load %arg5[%c0, %c0_1] : memref<256x64xf32, #tpu.memory_space<vmem>>, vector<256x64xf32>
    %c0_2 = arith.constant 0 : index
    %c0_3 = arith.constant 0 : index
    %4 = vector.load %arg3[%c0_2, %c0_3] : memref<256x147xbf16, #tpu.memory_space<vmem>>, vector<256x147xbf16>
    %c0_4 = arith.constant 0 : index
    %c0_5 = arith.constant 0 : index
    %5 = vector.load %arg4[%c0_4, %c0_5] : memref<147x64xbf16, #tpu.memory_space<vmem>>, vector<147x64xbf16>
    %cst = arith.constant dense<0.000000e+00> : vector<256x64xf32>
    %6 = tpu.matmul %4, %5, %cst {dimension_numbers = #tpu.dot_dimension_numbers<[1], [0], [0], [1], [0, 0, 1, 1], [], []>} : vector<256x147xbf16>, vector<147x64xbf16>, vector<256x64xf32> -> vector<256x64xf32>
    %7 = arith.addf %3, %6 : vector<256x64xf32>
    %c0_6 = arith.constant 0 : index
    %c0_7 = arith.constant 0 : index
    %8 = vector.load %arg5[%c0_6, %c0_7] : memref<256x64xf32, #tpu.memory_space<vmem>>, vector<256x64xf32>
    tpu.vector_store %arg5[%c0_6, %c0_7], %7 {strides = array<i32>} : memref<256x64xf32, #tpu.memory_space<vmem>>, vector<256x64xf32>,
    %c0_i32_8 = arith.constant 0 : i32
    %9 = arith.cmpi eq, %arg2, %c0_i32_8 : i32
    %10 = arith.extui %9 : i1 to i32
    %c0_i32_9 = arith.constant 0 : i32
    %11 = arith.cmpi ne, %10, %c0_i32_9 : i32
    scf.if %11 {
      %c0_10 = arith.constant 0 : index
      %c0_11 = arith.constant 0 : index
      %12 = vector.load %arg5[%c0_10, %c0_11] : memref<256x64xf32, #tpu.memory_space<vmem>>, vector<256x64xf32>
      %cst_12 = arith.constant dense<0.000000e+00> : vector<64xf32>
      %13 = vector.multi_reduction <add>, %12, %cst_12 [0] : vector<256x64xf32> to vector<64xf32>
      %14 = vector.shape_cast %13 : vector<64xf32> to vector<1x64xf32>
      %15 = arith.mulf %12, %12 : vector<256x64xf32>
      %cst_13 = arith.constant dense<0.000000e+00> : vector<64xf32>
      %16 = vector.multi_reduction <add>, %15, %cst_13 [0] : vector<256x64xf32> to vector<64xf32>
      %17 = vector.shape_cast %16 : vector<64xf32> to vector<1x64xf32>
      %18 = vector.shape_cast %14 : vector<1x64xf32> to vector<1x1x64xf32>
      %c0_14 = arith.constant 0 : index
      %c0_15 = arith.constant 0 : index
      %c0_16 = arith.constant 0 : index
      %19 = vector.load %arg6[%c0_14, %c0_15, %c0_16] : memref<1x1x64xf32, #tpu.memory_space<vmem>>, vector<1x1x64xf32>
      tpu.vector_store %arg6[%c0_14, %c0_15, %c0_16], %18 {strides = array<i32>} : memref<1x1x64xf32, #tpu.memory_space<vmem>>, vector<1x1x64xf32>,
      %20 = vector.shape_cast %17 : vector<1x64xf32> to vector<1x1x64xf32>
      %c0_17 = arith.constant 0 : index
      %c0_18 = arith.constant 0 : index
      %c0_19 = arith.constant 0 : index
      %21 = vector.load %arg7[%c0_17, %c0_18, %c0_19] : memref<1x1x64xf32, #tpu.memory_space<vmem>>, vector<1x1x64xf32>
      tpu.vector_store %arg7[%c0_17, %c0_18, %c0_19], %20 {strides = array<i32>} : memref<1x1x64xf32, #tpu.memory_space<vmem>>, vector<1x1x64xf32>,
    } else {
    }
    return
  }
  func.func @transform_0(%arg0: i32, %arg1: i32, %arg2: i32) -> (i32, i32) {
    %c0_i32 = arith.constant 0 : i32
    return %arg0, %arg2 : i32, i32
  }
  func.func @transform_1(%arg0: i32, %arg1: i32, %arg2: i32) -> (i32, i32) {
    %c0_i32 = arith.constant 0 : i32
    return %arg2, %arg1 : i32, i32
  }
  func.func @transform_2(%arg0: i32, %arg1: i32, %arg2: i32) -> (i32, i32) {
    %c0_i32 = arith.constant 0 : i32
    return %arg0, %arg1 : i32, i32
  }
  func.func @transform_3(%arg0: i32, %arg1: i32, %arg2: i32) -> (i32, i32, i32) {
    %c0_i32 = arith.constant 0 : i32
    %c0_i32_0 = arith.constant 0 : i32
    return %arg0, %c0_i32, %arg1 : i32, i32, i32
  }
  func.func @transform_4(%arg0: i32, %arg1: i32, %arg2: i32) -> (i32, i32, i32) {
    %c0_i32 = arith.constant 0 : i32
    %c0_i32_0 = arith.constant 0 : i32
    return %arg0, %c0_i32, %arg1 : i32, i32, i32
  }
}

</mosaic_0001>

<llo_original>
// kernel: tpu_custom_call.1
$region0: #{tpu_custom_call.1}
  #allocation0 [shape = 'u32[]', space=smem, size = 0x4, offset = 0x4, fixed_abs, tag = 'smem constant byte address 0x4 - core index']
  #allocation1 [shape = 'u32[144,128]{1,0:T(1,128)}', space=vmem, size = 0x12000, scoped, tag = 'internal scratch']
  %s0 = inlined_call_operand.vmem [shape: bf16[512,147], index: 0, kind: input, shape index: {}]
  %s1 = inlined_call_operand.vmem [shape: bf16[147,64], index: 1, kind: input, shape index: {}]
  %s2 = inlined_call_operand.vmem [shape: f32[512,64], index: 2, kind: output, shape index: {0}]
  %s3 = inlined_call_operand.hbm [shape: f32[2,1,64], index: 3, kind: output, shape index: {1}]
  %s4 = inlined_call_operand.hbm [shape: f32[2,1,64], index: 4, kind: output, shape index: {2}]
  %5 = xla_tuple %s2, %s3, %s4
  %s6 = sld [smem:[#allocation0]]
  $region65: #{tpu_custom_call.1} parent=0
    _
  %s8 = ssub.s32 1, %s6
  %s9 = scalar_select 0, %s8, %s6
  $region1: #{tpu_custom_call.1} parent=0
    #allocation2 [shape = 'u8[1024]{0}', space=vmem, size = 0x400, scoped, tag = 'output window, operand 1']
    #allocation3 [shape = 's32[2]{0}', space=sflag, size = 0x8, scoped, tag = 'scoped memory for tpu_custom_call.1']
    #allocation4 [shape = 'u8[1024]{0}', space=vmem, size = 0x400, scoped, tag = 'output window, operand 2']
    #allocation5 [shape = 's32[2]{0}', space=sflag, size = 0x8, scoped, tag = 'scoped memory for tpu_custom_call.1']
    %10 = vsyncpa [#allocation3], 0
    %s11 = scalar_lea.sflag [#allocation3], 1
    %12 = vsyncpa %s11, 0
    %13 = vsyncpa [#allocation5], 0
    %s14 = scalar_lea.sflag [#allocation5], 1
    %15 = vsyncpa %s14, 0
    loop: start=0, step=1, limit=4
    $region2: #{tpu_custom_call.1} parent=1 // loop_pre_header
      _
    $region3: #{tpu_custom_call.1} parent=1 // loop_header
      %s17 = sphi 0, %s21
      %p18 = scmp.ge.s32.totalorder %s17, 4
      %s24 = sphi 0, %s43
      %s25 = sphi 0, %s39
      %s26 = sphi 0, %s35
      %s27 = sphi 0, %s24
      %s28 = sphi 0, %s25
      %s29 = sphi 0, %s26
      %s30 = sphi 0, %s27
      %s31 = sphi 0, %s28
      %s32 = sphi 0, %s29
      %s48 = sphi 0, %s50
      %s51 = sphi 0, %s48
      %s52 = sphi 0, %s51
      %s68 = sphi 0, %s52
      %s76 = sphi 0, %s78
      %s79 = sphi 0, %s76
      %s80 = sphi 0, %s79
      %s96 = sphi 0, %s80
      %s104 = sphi 0, %s106
      %s107 = sphi 0, %s104
      %s108 = sphi 0, %s107
      %s124 = sphi 0, %s108
      %s132 = sphi 0, %s134
      %s135 = sphi 0, %s132
      %s136 = sphi 0, %s135
      %s152 = sphi 0, %s136
      %s160 = sphi 0, %s162
      %s163 = sphi 0, %s160
      %s164 = sphi 0, %s163
      %s180 = sphi 0, %s164
    $region4: #{tpu_custom_call.1} parent=1 // loop_header_branch
      %20 = sbr.rel (%p18) target = $region8
    $region5: #{tpu_custom_call.1} parent=1 // loop_body
      %s22 = ssub.s32 %s17, 1
      %s23 = ssub.s32 %s17, 2
      %s33 = sadd.s32 1, %s26
      %p34 = scmp.ge.s32.totalorder %s33, 1
      %s35 = scalar_select %p34, 0, %s33
      %s36 = sadd.s32 1, %s25
      %s37 = scalar_select %p34, %s36, %s25
      %p38 = scmp.ge.s32.totalorder %s37, 1
      %s39 = scalar_select %p38, 0, %s37
      %s40 = sadd.s32 1, %s24
      %s41 = scalar_select %p38, %s40, %s24
      %p42 = scmp.ge.s32.totalorder %s41, 2
      %s43 = scalar_select %p42, 0, %s41
      %s44 = ssub.s32 %s24, %s43
      %s45 = ssub.s32 %s26, %s35
      %s46 = sor.u32 %s44, %s45
      %p47 = scmp.eq.s32.totalorder %s46, 0
      %s49 = sadd.s32 %s48, 1
      %s50 = scalar_select %p47, %s48, %s49
      %p53 = pneg %p47
      %p54 = scmp.eq.s32.totalorder %s17, 1
      %p55 = por %p53, %p54
      %p56 = scmp.ne.s32.totalorder %s48, %s51
      %p57 = scmp.eq.s32.totalorder %s17, 0
      %p58 = por %p56, %p57
      %p59 = scmp.ne.s32.totalorder %s48, %s51
      %p60 = scmp.eq.s32.totalorder %s22, 1
      %p61 = por %p59, %p60
      %p62 = scmp.ne.s32.totalorder %s51, %s52
      %p63 = scmp.eq.s32.totalorder %s22, 0
      %p64 = por %p62, %p63
      %p65 = scmp.ne.s32.totalorder %s51, %s52
      %p66 = scmp.eq.s32.totalorder %s23, 1
      %p67 = por %p65, %p66
      %p69 = scmp.ne.s32.totalorder %s52, %s68
      %p70 = scmp.eq.s32.totalorder %s23, 0
      %p71 = por %p69, %p70
      %s72 = ssub.s32 %s26, %s35
      %s73 = ssub.s32 %s25, %s39
      %s74 = sor.u32 %s72, %s73
      %p75 = scmp.eq.s32.totalorder %s74, 0
      %s77 = sadd.s32 %s76, 1
      %s78 = scalar_select %p75, %s76, %s77
      %p81 = pneg %p75
      %p82 = scmp.eq.s32.totalorder %s17, 1
      %p83 = por %p81, %p82
      %p84 = scmp.ne.s32.totalorder %s76, %s79
      %p85 = scmp.eq.s32.totalorder %s17, 0
      %p86 = por %p84, %p85
      %p87 = scmp.ne.s32.totalorder %s76, %s79
      %p88 = scmp.eq.s32.totalorder %s22, 1
      %p89 = por %p87, %p88
      %p90 = scmp.ne.s32.totalorder %s79, %s80
      %p91 = scmp.eq.s32.totalorder %s22, 0
      %p92 = por %p90, %p91
      %p93 = scmp.ne.s32.totalorder %s79, %s80
      %p94 = scmp.eq.s32.totalorder %s23, 1
      %p95 = por %p93, %p94
      %p97 = scmp.ne.s32.totalorder %s80, %s96
      %p98 = scmp.eq.s32.totalorder %s23, 0
      %p99 = por %p97, %p98
      %s100 = ssub.s32 %s24, %s43
      %s101 = ssub.s32 %s25, %s39
      %s102 = sor.u32 %s100, %s101
      %p103 = scmp.eq.s32.totalorder %s102, 0
      %s105 = sadd.s32 %s104, 1
      %s106 = scalar_select %p103, %s104, %s105
      %p109 = pneg %p103
      %p110 = scmp.eq.s32.totalorder %s17, 1
      %p111 = por %p109, %p110
      %p112 = scmp.ne.s32.totalorder %s104, %s107
      %p113 = scmp.eq.s32.totalorder %s17, 0
      %p114 = por %p112, %p113
      %p115 = scmp.ne.s32.totalorder %s104, %s107
      %p116 = scmp.eq.s32.totalorder %s22, 1
      %p117 = por %p115, %p116
      %p118 = scmp.ne.s32.totalorder %s107, %s108
      %p119 = scmp.eq.s32.totalorder %s22, 0
      %p120 = por %p118, %p119
      %p121 = scmp.ne.s32.totalorder %s107, %s108
      %p122 = scmp.eq.s32.totalorder %s23, 1
      %p123 = por %p121, %p122
      %p125 = scmp.ne.s32.totalorder %s108, %s124
      %p126 = scmp.eq.s32.totalorder %s23, 0
      %p127 = por %p125, %p126
      %s128 = ssub.s32 %s24, %s43
      %s129 = ssub.s32 %s25, %s39
      %s130 = sor.u32 %s128, %s129
      %p131 = scmp.eq.s32.totalorder %s130, 0
      %s133 = sadd.s32 %s132, 1
      %s134 = scalar_select %p131, %s132, %s133
      %p137 = pneg %p131
      %p138 = scmp.eq.s32.totalorder %s17, 1
      %p139 = por %p137, %p138
      %p140 = scmp.ne.s32.totalorder %s132, %s135
      %p141 = scmp.eq.s32.totalorder %s17, 0
      %p142 = por %p140, %p141
      %p143 = scmp.ne.s32.totalorder %s132, %s135
      %p144 = scmp.eq.s32.totalorder %s22, 1
      %p145 = por %p143, %p144
      %p146 = scmp.ne.s32.totalorder %s135, %s136
      %p147 = scmp.eq.s32.totalorder %s22, 0
      %p148 = por %p146, %p147
      %p149 = scmp.ne.s32.totalorder %s135, %s136
      %p150 = scmp.eq.s32.totalorder %s23, 1
      %p151 = por %p149, %p150
      %p153 = scmp.ne.s32.totalorder %s136, %s152
      %p154 = scmp.eq.s32.totalorder %s23, 0
      %p155 = por %p153, %p154
      %s156 = ssub.s32 %s24, %s43
      %s157 = ssub.s32 %s25, %s39
      %s158 = sor.u32 %s156, %s157
      %p159 = scmp.eq.s32.totalorder %s158, 0
      %s161 = sadd.s32 %s160, 1
      %s162 = scalar_select %p159, %s160, %s161
      %p165 = pneg %p159
      %p166 = scmp.eq.s32.totalorder %s17, 1
      %p167 = por %p165, %p166
      %p168 = scmp.ne.s32.totalorder %s160, %s163
      %p169 = scmp.eq.s32.totalorder %s17, 0
      %p170 = por %p168, %p169
      %p171 = scmp.ne.s32.totalorder %s160, %s163
      %p172 = scmp.eq.s32.totalorder %s22, 1
      %p173 = por %p171, %p172
      %p174 = scmp.ne.s32.totalorder %s163, %s164
      %p175 = scmp.eq.s32.totalorder %s22, 0
      %p176 = por %p174, %p175
      %p177 = scmp.ne.s32.totalorder %s163, %s164
      %p178 = scmp.eq.s32.totalorder %s23, 1
      %p179 = por %p177, %p178
      %p181 = scmp.ne.s32.totalorder %s164, %s180
      %p182 = scmp.eq.s32.totalorder %s23, 0
      %p183 = por %p181, %p182
      %p184 = scmp.le.s32.totalorder 1, %s17
      %p185 = scmp.lt.s32.totalorder %s17, 3
      %p186 = pnand %p184, %p185
      %p187 = pneg %p186
      // Predicated region
      $region9: #{tpu_custom_call.1} parent=5 // pred_check
        _
      $region10: #{tpu_custom_call.1} parent=5 // pred_check_branch
        %189 = sbr.rel (%p186) target = $region12
      $region11: #{tpu_custom_call.1} parent=5 // pred_region
        %s190 = ssub.s32 %s17, 1
        // Predicated region
        $region13: #{tpu_custom_call.1} parent=11 // pred_check
          %p191 = pneg %p92
        $region14: #{tpu_custom_call.1} parent=11 // pred_check_branch
          %193 = sbr.rel (%p191) target = $region16
        $region15: #{tpu_custom_call.1} parent=11 // pred_region
          %s194 = smul.u32 19, %s29
          %p195 = scmp.lt.s32.totalorder %s194, 18
          %s196 = scalar_select %p195, %s194, 18
          %p197 = scmp.lt.s32.totalorder %s28, 0
          %s198 = scalar_select %p197, %s28, 0
          %s199 = sadd.s32 %s198, %s196
          %s200 = smul.addr %s199, 4
          %s201 = scalar_lea.vmem %s1, %s200
          %s202 = smul.u32 19, %s29
        $region16: #{tpu_custom_call.1} parent=11 // pred_fallthru
          _
      $region12: #{tpu_custom_call.1} parent=5 // pred_fallthru
        _
      %p203 = scmp.lt.s32.totalorder %s17, 2
      // Predicated region
      $region17: #{tpu_custom_call.1} parent=5 // pred_check
        %p204 = pneg %p203
      $region18: #{tpu_custom_call.1} parent=5 // pred_check_branch
        %206 = sbr.rel (%p204) target = $region20
      $region19: #{tpu_custom_call.1} parent=5 // pred_region
        // Predicated region
        $region21: #{tpu_custom_call.1} parent=19 // pred_check
          %p207 = pneg %p58
        $region22: #{tpu_custom_call.1} parent=19 // pred_check_branch
          %209 = sbr.rel (%p207) target = $region24
        $region23: #{tpu_custom_call.1} parent=19 // pred_region
          %s210 = smul.u32 32, %s24
          %s211 = smul.u32 2, %s26
          %p212 = scmp.lt.s32.totalorder %s210, 63
          %s213 = scalar_select %p212, %s210, 63
          %p214 = scmp.lt.s32.totalorder %s211, 1
          %s215 = scalar_select %p214, %s211, 1
          %s216 = smul.addr %s213, 2
          %s217 = sadd.s32 %s215, %s216
          %s218 = smul.addr %s217, 4
          %s219 = scalar_lea.vmem %s0, %s218
          %s220 = smul.u32 32, %s24
          %s221 = smul.u32 2, %s26
        $region24: #{tpu_custom_call.1} parent=19 // pred_fallthru
          _
      $region20: #{tpu_custom_call.1} parent=5 // pred_fallthru
        _
      %p222 = scmp.le.s32.totalorder 1, %s17
      %p223 = scmp.lt.s32.totalorder %s17, 3
      %p224 = pnand %p222, %p223
      %p225 = pneg %p224
      // Predicated region
      $region25: #{tpu_custom_call.1} parent=5 // pred_check
        _
      $region26: #{tpu_custom_call.1} parent=5 // pred_check_branch
        %227 = sbr.rel (%p224) target = $region28
      $region27: #{tpu_custom_call.1} parent=5 // pred_region
        %s228 = ssub.s32 %s17, 1
        %s229 = smul.u32 32, %s27
        %s230 = smul.u32 2, %s29
        %p231 = scmp.lt.s32.totalorder %s229, 63
        %s232 = scalar_select %p231, %s229, 63
        %p233 = scmp.lt.s32.totalorder %s230, 1
        %s234 = scalar_select %p233, %s230, 1
        %s235 = smul.addr %s232, 2
        %s236 = sadd.s32 %s234, %s235
        %s237 = smul.addr %s236, 4
        %s238 = scalar_lea.vmem %s0, %s237
        %p239 = pneg %p64
        %p240 = pneg %p61
        %s241 = smul.u32 19, %s29
        %p242 = scmp.lt.s32.totalorder %s241, 18
        %s243 = scalar_select %p242, %s241, 18
        %p244 = scmp.lt.s32.totalorder %s28, 0
        %s245 = scalar_select %p244, %s28, 0
        %s246 = sadd.s32 %s245, %s243
        %s247 = smul.addr %s246, 4
        %s248 = scalar_lea.vmem %s1, %s247
        %p249 = pneg %p92
        %p250 = pneg %p89
        %p251 = pneg %p120
        %p252 = pneg %p117
        %s253 = smul.u32 32, %s27
        %p254 = scmp.lt.s32.totalorder %s253, 63
        %s255 = scalar_select %p254, %s253, 63
        %p256 = scmp.lt.s32.totalorder %s28, 0
        %s257 = scalar_select %p256, %s28, 0
        %s258 = sadd.s32 %s257, %s255
        %s259 = smul.addr %s258, 8
        %s260 = scalar_lea.vmem %s2, %s259
        %p261 = pneg %p148
        %p262 = pneg %p145
        %s263 = sand.u32 %s135, 1
        %s264 = scalar_lea.sflag [#allocation3], %s263
        %s265 = sand.u32 %s135, 1
        %s266 = scalar_lea.vmem [#allocation2], %s265
        %p267 = pneg %p176
        %p268 = pneg %p173
        %s269 = sand.u32 %s163, 1
        %s270 = scalar_lea.sflag [#allocation5], %s269
        %s271 = sand.u32 %s163, 1
        %s272 = scalar_lea.vmem [#allocation4], %s271
        %s273 = smul.u32 32, %s27
        %s274 = smul.u32 2, %s29
        %p275 = scmp.lt.s32.totalorder %s273, 63
        %s276 = scalar_select %p275, %s273, 63
        %p277 = scmp.lt.s32.totalorder %s274, 1
        %s278 = scalar_select %p277, %s274, 1
        %s279 = smul.addr %s276, 2
        %s280 = sadd.s32 %s278, %s279
        %s281 = smul.addr %s280, 4
        %s282 = scalar_lea.vmem %s0, %s281
        %s283 = smul.u32 32, %s27
        %s284 = smul.u32 2, %s29
        %s285 = smul.u32 19, %s29
        %p286 = scmp.lt.s32.totalorder %s285, 18
        %s287 = scalar_select %p286, %s285, 18
        %p288 = scmp.lt.s32.totalorder %s28, 0
        %s289 = scalar_select %p288, %s28, 0
        %s290 = sadd.s32 %s289, %s287
        %s291 = smul.addr %s290, 4
        %s292 = scalar_lea.vmem %s1, %s291
        %s293 = smul.u32 19, %s29
        %s294 = smul.u32 32, %s27
        %p295 = scmp.lt.s32.totalorder %s294, 63
        %s296 = scalar_select %p295, %s294, 63
        %p297 = scmp.lt.s32.totalorder %s28, 0
        %s298 = scalar_select %p297, %s28, 0
        %s299 = sadd.s32 %s298, %s296
        %s300 = smul.addr %s299, 8
        %s301 = scalar_lea.vmem %s2, %s300
        %s302 = smul.u32 32, %s27
        %p304 = scmp.eq.s32.totalorder %s29, 0
        // Predicated region
        $region29: #{tpu_custom_call.1} parent=27 // pred_check
          %p305 = pneg %p304
        $region30: #{tpu_custom_call.1} parent=27 // pred_check_branch
          %307 = sbr.rel (%p305) target = $region32
        $region31: #{tpu_custom_call.1} parent=27 // pred_region
          %vm308 = vcmask 523264
          %309 = vst.msk [vmem:[%s301] sm:$0xff] %vm308, 0.0
          %310 = vst.msk [vmem:[%s301 + $0x8] sm:$0xff] %vm308, 0.0
          %311 = vst.msk [vmem:[%s301 + $0x10] sm:$0xff] %vm308, 0.0
          %312 = vst.msk [vmem:[%s301 + $0x18] sm:$0xff] %vm308, 0.0
          %313 = vst.msk [vmem:[%s301 + $0x20] sm:$0xff] %vm308, 0.0
          %314 = vst.msk [vmem:[%s301 + $0x28] sm:$0xff] %vm308, 0.0
          %315 = vst.msk [vmem:[%s301 + $0x30] sm:$0xff] %vm308, 0.0
          %316 = vst.msk [vmem:[%s301 + $0x38] sm:$0xff] %vm308, 0.0
          %317 = vst.msk [vmem:[%s301 + $0x40] sm:$0xff] %vm308, 0.0
          %318 = vst.msk [vmem:[%s301 + $0x48] sm:$0xff] %vm308, 0.0
          %319 = vst.msk [vmem:[%s301 + $0x50] sm:$0xff] %vm308, 0.0
          %320 = vst.msk [vmem:[%s301 + $0x58] sm:$0xff] %vm308, 0.0
          %321 = vst.msk [vmem:[%s301 + $0x60] sm:$0xff] %vm308, 0.0
          %322 = vst.msk [vmem:[%s301 + $0x68] sm:$0xff] %vm308, 0.0
          %323 = vst.msk [vmem:[%s301 + $0x70] sm:$0xff] %vm308, 0.0
          %324 = vst.msk [vmem:[%s301 + $0x78] sm:$0xff] %vm308, 0.0
          %325 = vst.msk [vmem:[%s301 + $0x80] sm:$0xff] %vm308, 0.0
          %326 = vst.msk [vmem:[%s301 + $0x88] sm:$0xff] %vm308, 0.0
          %327 = vst.msk [vmem:[%s301 + $0x90] sm:$0xff] %vm308, 0.0
          %328 = vst.msk [vmem:[%s301 + $0x98] sm:$0xff] %vm308, 0.0
          %329 = vst.msk [vmem:[%s301 + $0xa0] sm:$0xff] %vm308, 0.0
          %330 = vst.msk [vmem:[%s301 + $0xa8] sm:$0xff] %vm308, 0.0
          %331 = vst.msk [vmem:[%s301 + $0xb0] sm:$0xff] %vm308, 0.0
          %332 = vst.msk [vmem:[%s301 + $0xb8] sm:$0xff] %vm308, 0.0
          %333 = vst.msk [vmem:[%s301 + $0xc0] sm:$0xff] %vm308, 0.0
          %334 = vst.msk [vmem:[%s301 + $0xc8] sm:$0xff] %vm308, 0.0
          %335 = vst.msk [vmem:[%s301 + $0xd0] sm:$0xff] %vm308, 0.0
          %336 = vst.msk [vmem:[%s301 + $0xd8] sm:$0xff] %vm308, 0.0
          %337 = vst.msk [vmem:[%s301 + $0xe0] sm:$0xff] %vm308, 0.0
          %338 = vst.msk [vmem:[%s301 + $0xe8] sm:$0xff] %vm308, 0.0
          %339 = vst.msk [vmem:[%s301 + $0xf0] sm:$0xff] %vm308, 0.0
          %340 = vst.msk [vmem:[%s301 + $0xf8] sm:$0xff] %vm308, 0.0
        $region32: #{tpu_custom_call.1} parent=27 // pred_fallthru
          _
        %v341 = vld [vmem:[%s301] sm:$0xff]
        %v342 = vld [vmem:[%s301 + $0x8] sm:$0xff]
        %v343 = vld [vmem:[%s301 + $0x10] sm:$0xff]
        %v344 = vld [vmem:[%s301 + $0x18] sm:$0xff]
        %v345 = vld [vmem:[%s301 + $0x20] sm:$0xff]
        %v346 = vld [vmem:[%s301 + $0x28] sm:$0xff]
        %v347 = vld [vmem:[%s301 + $0x30] sm:$0xff]
        %v348 = vld [vmem:[%s301 + $0x38] sm:$0xff]
        %v349 = vld [vmem:[%s301 + $0x40] sm:$0xff]
        %v350 = vld [vmem:[%s301 + $0x48] sm:$0xff]
        %v351 = vld [vmem:[%s301 + $0x50] sm:$0xff]
        %v352 = vld [vmem:[%s301 + $0x58] sm:$0xff]
        %v353 = vld [vmem:[%s301 + $0x60] sm:$0xff]
        %v354 = vld [vmem:[%s301 + $0x68] sm:$0xff]
        %v355 = vld [vmem:[%s301 + $0x70] sm:$0xff]
        %v356 = vld [vmem:[%s301 + $0x78] sm:$0xff]
        %v357 = vld [vmem:[%s301 + $0x80] sm:$0xff]
        %v358 = vld [vmem:[%s301 + $0x88] sm:$0xff]
        %v359 = vld [vmem:[%s301 + $0x90] sm:$0xff]
        %v360 = vld [vmem:[%s301 + $0x98] sm:$0xff]
        %v361 = vld [vmem:[%s301 + $0xa0] sm:$0xff]
        %v362 = vld [vmem:[%s301 + $0xa8] sm:$0xff]
        %v363 = vld [vmem:[%s301 + $0xb0] sm:$0xff]
        %v364 = vld [vmem:[%s301 + $0xb8] sm:$0xff]
        %v365 = vld [vmem:[%s301 + $0xc0] sm:$0xff]
        %v366 = vld [vmem:[%s301 + $0xc8] sm:$0xff]
        %v367 = vld [vmem:[%s301 + $0xd0] sm:$0xff]
        %v368 = vld [vmem:[%s301 + $0xd8] sm:$0xff]
        %v369 = vld [vmem:[%s301 + $0xe0] sm:$0xff]
        %v370 = vld [vmem:[%s301 + $0xe8] sm:$0xff]
        %v371 = vld [vmem:[%s301 + $0xf0] sm:$0xff]
        %v372 = vld [vmem:[%s301 + $0xf8] sm:$0xff]
        %v373 = vld [vmem:[%s282] sm:$0xff]
        %v374 = vld [vmem:[%s282 + $0x8] sm:$0xff]
        %v375 = vld [vmem:[%s282 + $0x10] sm:$0xff]
        %v376 = vld [vmem:[%s282 + $0x18] sm:$0xff]
        %v377 = vld [vmem:[%s282 + $0x20] sm:$0xff]
        %v378 = vld [vmem:[%s282 + $0x28] sm:$0xff]
        %v379 = vld [vmem:[%s282 + $0x30] sm:$0xff]
        %v380 = vld [vmem:[%s282 + $0x38] sm:$0xff]
        %v381 = vld [vmem:[%s282 + $0x40] sm:$0xff]
        %v382 = vld [vmem:[%s282 + $0x48] sm:$0xff]
        %v383 = vld [vmem:[%s282 + $0x50] sm:$0xff]
        %v384 = vld [vmem:[%s282 + $0x58] sm:$0xff]
        %v385 = vld [vmem:[%s282 + $0x60] sm:$0xff]
        %v386 = vld [vmem:[%s282 + $0x68] sm:$0xff]
        %v387 = vld [vmem:[%s282 + $0x70] sm:$0xff]
        %v388 = vld [vmem:[%s282 + $0x78] sm:$0xff]
        %v389 = vld [vmem:[%s282 + $0x80] sm:$0xff]
        %v390 = vld [vmem:[%s282 + $0x88] sm:$0xff]
        %v391 = vld [vmem:[%s282 + $0x90] sm:$0xff]
        %v392 = vld [vmem:[%s282 + $0x98] sm:$0xff]
        %v393 = vld [vmem:[%s282 + $0xa0] sm:$0xff]
        %v394 = vld [vmem:[%s282 + $0xa8] sm:$0xff]
        %v395 = vld [vmem:[%s282 + $0xb0] sm:$0xff]
        %v396 = vld [vmem:[%s282 + $0xb8] sm:$0xff]
        %v397 = vld [vmem:[%s282 + $0xc0] sm:$0xff]
        %v398 = vld [vmem:[%s282 + $0xc8] sm:$0xff]
        %v399 = vld [vmem:[%s282 + $0xd0] sm:$0xff]
        %v400 = vld [vmem:[%s282 + $0xd8] sm:$0xff]
        %v401 = vld [vmem:[%s282 + $0xe0] sm:$0xff]
        %v402 = vld [vmem:[%s282 + $0xe8] sm:$0xff]
        %v403 = vld [vmem:[%s282 + $0xf0] sm:$0xff]
        %v404 = vld [vmem:[%s282 + $0xf8] sm:$0xff]
        %v405 = vld [vmem:[%s292] sm:$0xf]
        %v406 = vld [vmem:[%s292 + $0x4] sm:$0xf]
        %v407 = vld [vmem:[%s292 + $0x8] sm:$0xf]
        %v408 = vld [vmem:[%s292 + $0xc] sm:$0xf]
        %v409 = vld [vmem:[%s292 + $0x10] sm:$0xf]
        %v410 = vld [vmem:[%s292 + $0x14] sm:$0xf]
        %v411 = vld [vmem:[%s292 + $0x18] sm:$0xf]
        %v412 = vld [vmem:[%s292 + $0x1c] sm:$0xf]
        %v413 = vld [vmem:[%s292 + $0x20] sm:$0xf]
        %v414 = vld [vmem:[%s292 + $0x24] sm:$0xf]
        %v415 = vld [vmem:[%s292 + $0x28] sm:$0xf]
        %v416 = vld [vmem:[%s292 + $0x2c] sm:$0xf]
        %v417 = vld [vmem:[%s292 + $0x30] sm:$0xf]
        %v418 = vld [vmem:[%s292 + $0x34] sm:$0xf]
        %v419 = vld [vmem:[%s292 + $0x38] sm:$0xf]
        %v420 = vld [vmem:[%s292 + $0x3c] sm:$0xf]
        %v421 = vld [vmem:[%s292 + $0x40] sm:$0xf]
        %v422 = vld [vmem:[%s292 + $0x44] sm:$0xf]
        %v423 = vld [vmem:[%s292 + $0x48] sm:$0x3]
        %v456 = vunpack.c.l.b16 %v373
        %v457 = vunpack.c.h.b16 %v373
        %v458 = vunpack.c.l.b16 %v374
        %v459 = vunpack.c.h.b16 %v374
        %v460 = vunpack.c.l.b16 %v375
        %v461 = vunpack.c.h.b16 %v375
        %v462 = vunpack.c.l.b16 %v376
        %v463 = vunpack.c.h.b16 %v376
        %v464 = vunpack.c.l.b16 %v377
        %v465 = vunpack.c.h.b16 %v377
        %v466 = vunpack.c.l.b16 %v378
        %v467 = vunpack.c.h.b16 %v378
        %v468 = vunpack.c.l.b16 %v379
        %v469 = vunpack.c.h.b16 %v379
        %v470 = vunpack.c.l.b16 %v380
        %v471 = vunpack.c.h.b16 %v380
        %v472 = vunpack.c.l.b16 %v381
        %v473 = vunpack.c.h.b16 %v381
        %v474 = vunpack.c.l.b16 %v382
        %v475 = vunpack.c.h.b16 %v382
        %v476 = vunpack.c.l.b16 %v383
        %v477 = vunpack.c.h.b16 %v383
        %v478 = vunpack.c.l.b16 %v384
        %v479 = vunpack.c.h.b16 %v384
        %v480 = vunpack.c.l.b16 %v385
        %v481 = vunpack.c.h.b16 %v385
        %v482 = vunpack.c.l.b16 %v386
        %v483 = vunpack.c.h.b16 %v386
        %v484 = vunpack.c.l.b16 %v387
        %v485 = vunpack.c.h.b16 %v387
        %v486 = vunpack.c.l.b16 %v388
        %v487 = vunpack.c.h.b16 %v388
        %v488 = vunpack.c.l.b16 %v389
        %v489 = vunpack.c.h.b16 %v389
        %v490 = vunpack.c.l.b16 %v390
        %v491 = vunpack.c.h.b16 %v390
        %v492 = vunpack.c.l.b16 %v391
        %v493 = vunpack.c.h.b16 %v391
        %v494 = vunpack.c.l.b16 %v392
        %v495 = vunpack.c.h.b16 %v392
        %v496 = vunpack.c.l.b16 %v393
        %v497 = vunpack.c.h.b16 %v393
        %v498 = vunpack.c.l.b16 %v394
        %v499 = vunpack.c.h.b16 %v394
        %v500 = vunpack.c.l.b16 %v395
        %v501 = vunpack.c.h.b16 %v395
        %v502 = vunpack.c.l.b16 %v396
        %v503 = vunpack.c.h.b16 %v396
        %v504 = vunpack.c.l.b16 %v397
        %v505 = vunpack.c.h.b16 %v397
        %v506 = vunpack.c.l.b16 %v398
        %v507 = vunpack.c.h.b16 %v398
        %v508 = vunpack.c.l.b16 %v399
        %v509 = vunpack.c.h.b16 %v399
        %v510 = vunpack.c.l.b16 %v400
        %v511 = vunpack.c.h.b16 %v400
        %v512 = vunpack.c.l.b16 %v401
        %v513 = vunpack.c.h.b16 %v401
        %v514 = vunpack.c.l.b16 %v402
        %v515 = vunpack.c.h.b16 %v402
        %v516 = vunpack.c.l.b16 %v403
        %v517 = vunpack.c.h.b16 %v403
        %v518 = vunpack.c.l.b16 %v404
        %v519 = vunpack.c.h.b16 %v404
        %v520 = vpack.c.b16 %v458, %v456
        %v521 = vpack.c.b16 %v459, %v457
        %v522 = vpack.c.b16 %v462, %v460
        %v523 = vpack.c.b16 %v463, %v461
        %v524 = vpack.c.b16 %v466, %v464
        %v525 = vpack.c.b16 %v467, %v465
        %v526 = vpack.c.b16 %v470, %v468
        %v527 = vpack.c.b16 %v471, %v469
        %v528 = vpack.c.b16 %v474, %v472
        %v529 = vpack.c.b16 %v475, %v473
        %v530 = vpack.c.b16 %v478, %v476
        %v531 = vpack.c.b16 %v479, %v477
        %v532 = vpack.c.b16 %v482, %v480
        %v533 = vpack.c.b16 %v483, %v481
        %v534 = vpack.c.b16 %v486, %v484
        %v535 = vpack.c.b16 %v487, %v485
        %v536 = vpack.c.b16 %v490, %v488
        %v537 = vpack.c.b16 %v491, %v489
        %v538 = vpack.c.b16 %v494, %v492
        %v539 = vpack.c.b16 %v495, %v493
        %v540 = vpack.c.b16 %v498, %v496
        %v541 = vpack.c.b16 %v499, %v497
        %v542 = vpack.c.b16 %v502, %v500
        %v543 = vpack.c.b16 %v503, %v501
        %v544 = vpack.c.b16 %v506, %v504
        %v545 = vpack.c.b16 %v507, %v505
        %v546 = vpack.c.b16 %v510, %v508
        %v547 = vpack.c.b16 %v511, %v509
        %v548 = vpack.c.b16 %v514, %v512
        %v549 = vpack.c.b16 %v515, %v513
        %v550 = vpack.c.b16 %v518, %v516
        %v551 = vpack.c.b16 %v519, %v517
        %v587 = vunpack.c.l.b16 %v405
        %v588 = vunpack.c.l.b16 %v406
        %v589 = vunpack.c.l.b16 %v407
        %v590 = vunpack.c.l.b16 %v408
        %v591 = vunpack.c.l.b16 %v409
        %v592 = vunpack.c.l.b16 %v410
        %v593 = vunpack.c.l.b16 %v411
        %v594 = vunpack.c.l.b16 %v412
        %v595 = vunpack.c.l.b16 %v413
        %v596 = vunpack.c.l.b16 %v414
        %v597 = vunpack.c.l.b16 %v415
        %v598 = vunpack.c.l.b16 %v416
        %v599 = vunpack.c.l.b16 %v417
        %v600 = vunpack.c.l.b16 %v418
        %v601 = vunpack.c.l.b16 %v419
        %v602 = vunpack.c.l.b16 %v420
        %v603 = vunpack.c.l.b16 %v421
        %v604 = vunpack.c.l.b16 %v422
        %v605 = vunpack.c.l.b16 %v423
        %v606 = vpack.c.b16 %v588, %v587
        %v607 = vpack.c.b16 %v590, %v589
        %v608 = vpack.c.b16 %v592, %v591
        %v609 = vpack.c.b16 %v594, %v593
        %v610 = vpack.c.b16 %v596, %v595
        %v611 = vpack.c.b16 %v598, %v597
        %v612 = vpack.c.b16 %v600, %v599
        %v613 = vpack.c.b16 %v602, %v601
        %v614 = vpack.c.b16 %v604, %v603
        %v615 = vpack.c.b16 %v605, %v605
        %vm625 = vcmask 154624
        %v627 = vsel %vm625, %v521, 0
        %v630 = vsel %vm625, %v523, 0
        %v633 = vsel %vm625, %v525, 0
        %v636 = vsel %vm625, %v527, 0
        %v639 = vsel %vm625, %v529, 0
        %v642 = vsel %vm625, %v531, 0
        %v645 = vsel %vm625, %v533, 0
        %v648 = vsel %vm625, %v535, 0
        %v651 = vsel %vm625, %v537, 0
        %v654 = vsel %vm625, %v539, 0
        %v657 = vsel %vm625, %v541, 0
        %v660 = vsel %vm625, %v543, 0
        %v663 = vsel %vm625, %v545, 0
        %v666 = vsel %vm625, %v547, 0
        %v669 = vsel %vm625, %v549, 0
        %v672 = vsel %vm625, %v551, 0
        %vm674 = vcmask 1040384
        %vm675 = vcmask 1041408
        %v676 = vsel %vm674, 4294967295, 65535
        %v677 = vsel %vm675, %v676, 0
        %v679 = vand.u32 %v615, %v677
        %681 = vmatprep.subr.bf16.mxu0 0
        %682 = vmatpush1.bf16.msra.mxu0 %v613
        %683 = vmatprep.subr.bf16.mxu0 0
        %684 = vmatpush1.bf16.msra.mxu0 %v612
        %685 = vmatprep.subr.bf16.mxu0 0
        %686 = vmatpush1.bf16.msra.mxu0 %v611
        %687 = vmatprep.subr.bf16.mxu0 0
        %688 = vmatpush1.bf16.msra.mxu0 %v610
        %689 = vmatprep.subr.bf16.mxu0 0
        %690 = vmatpush1.bf16.msra.mxu0 %v609
        %691 = vmatprep.subr.bf16.mxu0 0
        %692 = vmatpush1.bf16.msra.mxu0 %v608
        %693 = vmatprep.subr.bf16.mxu0 0
        %694 = vmatpush1.bf16.msra.mxu0 %v607
        %695 = vmatprep.subr.bf16.mxu0 0
        %696 = vmatpush1.bf16.msra.mxu0 %v606
        %697 = vmatprep.subr.bf16.mxu0 0
        %698 = vmatpush2.bf16.msra.mxu0 0
        %699 = vmatprep.subr.bf16.mxu0 0
        %700 = vmatpush2.bf16.msra.mxu0 0
        %701 = vmatprep.subr.bf16.mxu0 0
        %702 = vmatpush2.bf16.msra.mxu0 0
        %703 = vmatprep.subr.bf16.mxu0 0
        %704 = vmatpush2.bf16.msra.mxu0 0
        %705 = vmatprep.subr.bf16.mxu0 0
        %706 = vmatpush2.bf16.msra.mxu0 0
        %707 = vmatprep.subr.bf16.mxu0 0
        %708 = vmatpush2.bf16.msra.mxu0 0
        %709 = vmatprep.subr.bf16.mxu0 0
        %710 = vmatpush2.bf16.msra.mxu0 %v679
        %711 = vmatprep.subr.bf16.mxu0 0
        %712 = vmatpush2.bf16.msra.mxu0 %v614
        %713 = vmatprep.mubr.bf16.mxu0 %v627
        %714 = vmatmul.mubr.bf16.gmra.mxu0 %v520
        %v715 = vpop.f32.mrf.mxu0
        %v716 = vadd.f32 0.0, %v715
        %v717 = vpop.f32.mrf.mxu0
        %v718 = vpop.f32.mrf.mxu0
        %v719 = vadd.f32 0.0, %v718
        %v720 = vpop.f32.mrf.mxu0
        %721 = vmatprep.mubr.bf16.mxu0 %v630
        %722 = vmatmul.mubr.bf16.gmra.mxu0 %v522
        %v723 = vpop.f32.mrf.mxu0
        %v724 = vadd.f32 0.0, %v723
        %v725 = vpop.f32.mrf.mxu0
        %v726 = vpop.f32.mrf.mxu0
        %v727 = vadd.f32 0.0, %v726
        %v728 = vpop.f32.mrf.mxu0
        %729 = vmatprep.mubr.bf16.mxu0 %v633
        %730 = vmatmul.mubr.bf16.gmra.mxu0 %v524
        %v731 = vpop.f32.mrf.mxu0
        %v732 = vadd.f32 0.0, %v731
        %v733 = vpop.f32.mrf.mxu0
        %v734 = vpop.f32.mrf.mxu0
        %v735 = vadd.f32 0.0, %v734
        %v736 = vpop.f32.mrf.mxu0
        %737 = vmatprep.mubr.bf16.mxu0 %v636
        %738 = vmatmul.mubr.bf16.gmra.mxu0 %v526
        %v739 = vpop.f32.mrf.mxu0
        %v740 = vadd.f32 0.0, %v739
        %v741 = vpop.f32.mrf.mxu0
        %v742 = vpop.f32.mrf.mxu0
        %v743 = vadd.f32 0.0, %v742
        %v744 = vpop.f32.mrf.mxu0
        %745 = vmatprep.mubr.bf16.mxu0 %v639
        %746 = vmatmul.mubr.bf16.gmra.mxu0 %v528
        %v747 = vpop.f32.mrf.mxu0
        %v748 = vadd.f32 0.0, %v747
        %v749 = vpop.f32.mrf.mxu0
        %v750 = vpop.f32.mrf.mxu0
        %v751 = vadd.f32 0.0, %v750
        %v752 = vpop.f32.mrf.mxu0
        %753 = vmatprep.mubr.bf16.mxu0 %v642
        %754 = vmatmul.mubr.bf16.gmra.mxu0 %v530
        %v755 = vpop.f32.mrf.mxu0
        %v756 = vadd.f32 0.0, %v755
        %v757 = vpop.f32.mrf.mxu0
        %v758 = vpop.f32.mrf.mxu0
        %v759 = vadd.f32 0.0, %v758
        %v760 = vpop.f32.mrf.mxu0
        %761 = vmatprep.mubr.bf16.mxu0 %v645
        %762 = vmatmul.mubr.bf16.gmra.mxu0 %v532
        %v763 = vpop.f32.mrf.mxu0
        %v764 = vadd.f32 0.0, %v763
        %v765 = vpop.f32.mrf.mxu0
        %v766 = vpop.f32.mrf.mxu0
        %v767 = vadd.f32 0.0, %v766
        %v768 = vpop.f32.mrf.mxu0
        %769 = vmatprep.mubr.bf16.mxu0 %v648
        %770 = vmatmul.mubr.bf16.gmra.mxu0 %v534
        %v771 = vpop.f32.mrf.mxu0
        %v772 = vadd.f32 0.0, %v771
        %v773 = vpop.f32.mrf.mxu0
        %v774 = vpop.f32.mrf.mxu0
        %v775 = vadd.f32 0.0, %v774
        %v776 = vpop.f32.mrf.mxu0
        %777 = vmatprep.mubr.bf16.mxu0 %v651
        %778 = vmatmul.mubr.bf16.gmra.mxu0 %v536
        %v779 = vpop.f32.mrf.mxu0
        %v780 = vadd.f32 0.0, %v779
        %v781 = vpop.f32.mrf.mxu0
        %v782 = vpop.f32.mrf.mxu0
        %v783 = vadd.f32 0.0, %v782
        %v784 = vpop.f32.mrf.mxu0
        %785 = vmatprep.mubr.bf16.mxu0 %v654
        %786 = vmatmul.mubr.bf16.gmra.mxu0 %v538
        %v787 = vpop.f32.mrf.mxu0
        %v788 = vadd.f32 0.0, %v787
        %v789 = vpop.f32.mrf.mxu0
        %v790 = vpop.f32.mrf.mxu0
        %v791 = vadd.f32 0.0, %v790
        %v792 = vpop.f32.mrf.mxu0
        %793 = vmatprep.mubr.bf16.mxu0 %v657
        %794 = vmatmul.mubr.bf16.gmra.mxu0 %v540
        %v795 = vpop.f32.mrf.mxu0
        %v796 = vadd.f32 0.0, %v795
        %v797 = vpop.f32.mrf.mxu0
        %v798 = vpop.f32.mrf.mxu0
        %v799 = vadd.f32 0.0, %v798
        %v800 = vpop.f32.mrf.mxu0
        %801 = vmatprep.mubr.bf16.mxu0 %v660
        %802 = vmatmul.mubr.bf16.gmra.mxu0 %v542
        %v803 = vpop.f32.mrf.mxu0
        %v804 = vadd.f32 0.0, %v803
        %v805 = vpop.f32.mrf.mxu0
        %v806 = vpop.f32.mrf.mxu0
        %v807 = vadd.f32 0.0, %v806
        %v808 = vpop.f32.mrf.mxu0
        %809 = vmatprep.mubr.bf16.mxu0 %v663
        %810 = vmatmul.mubr.bf16.gmra.mxu0 %v544
        %v811 = vpop.f32.mrf.mxu0
        %v812 = vadd.f32 0.0, %v811
        %v813 = vpop.f32.mrf.mxu0
        %v814 = vpop.f32.mrf.mxu0
        %v815 = vadd.f32 0.0, %v814
        %v816 = vpop.f32.mrf.mxu0
        %817 = vmatprep.mubr.bf16.mxu0 %v666
        %818 = vmatmul.mubr.bf16.gmra.mxu0 %v546
        %v819 = vpop.f32.mrf.mxu0
        %v820 = vadd.f32 0.0, %v819
        %v821 = vpop.f32.mrf.mxu0
        %v822 = vpop.f32.mrf.mxu0
        %v823 = vadd.f32 0.0, %v822
        %v824 = vpop.f32.mrf.mxu0
        %825 = vmatprep.mubr.bf16.mxu0 %v669
        %826 = vmatmul.mubr.bf16.gmra.mxu0 %v548
        %v827 = vpop.f32.mrf.mxu0
        %v828 = vadd.f32 0.0, %v827
        %v829 = vpop.f32.mrf.mxu0
        %v830 = vpop.f32.mrf.mxu0
        %v831 = vadd.f32 0.0, %v830
        %v832 = vpop.f32.mrf.mxu0
        %833 = vmatprep.mubr.bf16.mxu0 %v672
        %834 = vmatmul.mubr.bf16.gmra.mxu0 %v550
        %v835 = vpop.f32.mrf.mxu0
        %v836 = vadd.f32 0.0, %v835
        %v837 = vpop.f32.mrf.mxu0
        %v838 = vpop.f32.mrf.mxu0
        %v839 = vadd.f32 0.0, %v838
        %v840 = vpop.f32.mrf.mxu0
        %841 = vdwg.mxu0
        %v842 = vadd.f32 %v341, %v716
        %v843 = vadd.f32 %v342, %v719
        %v844 = vadd.f32 %v343, %v724
        %v845 = vadd.f32 %v344, %v727
        %v846 = vadd.f32 %v345, %v732
        %v847 = vadd.f32 %v346, %v735
        %v848 = vadd.f32 %v347, %v740
        %v849 = vadd.f32 %v348, %v743
        %v850 = vadd.f32 %v349, %v748
        %v851 = vadd.f32 %v350, %v751
        %v852 = vadd.f32 %v351, %v756
        %v853 = vadd.f32 %v352, %v759
        %v854 = vadd.f32 %v353, %v764
        %v855 = vadd.f32 %v354, %v767
        %v856 = vadd.f32 %v355, %v772
        %v857 = vadd.f32 %v356, %v775
        %v858 = vadd.f32 %v357, %v780
        %v859 = vadd.f32 %v358, %v783
        %v860 = vadd.f32 %v359, %v788
        %v861 = vadd.f32 %v360, %v791
        %v862 = vadd.f32 %v361, %v796
        %v863 = vadd.f32 %v362, %v799
        %v864 = vadd.f32 %v363, %v804
        %v865 = vadd.f32 %v364, %v807
        %v866 = vadd.f32 %v365, %v812
        %v867 = vadd.f32 %v366, %v815
        %v868 = vadd.f32 %v367, %v820
        %v869 = vadd.f32 %v368, %v823
        %v870 = vadd.f32 %v369, %v828
        %v871 = vadd.f32 %v370, %v831
        %v872 = vadd.f32 %v371, %v836
        %v873 = vadd.f32 %v372, %v839
        %vm874 = vcmask 523264
        %875 = vst.msk [vmem:[%s301] sm:$0xff] %vm874, %v842
        %876 = vst.msk [vmem:[%s301 + $0x8] sm:$0xff] %vm874, %v843
        %877 = vst.msk [vmem:[%s301 + $0x10] sm:$0xff] %vm874, %v844
        %878 = vst.msk [vmem:[%s301 + $0x18] sm:$0xff] %vm874, %v845
        %879 = vst.msk [vmem:[%s301 + $0x20] sm:$0xff] %vm874, %v846
        %880 = vst.msk [vmem:[%s301 + $0x28] sm:$0xff] %vm874, %v847
        %881 = vst.msk [vmem:[%s301 + $0x30] sm:$0xff] %vm874, %v848
        %882 = vst.msk [vmem:[%s301 + $0x38] sm:$0xff] %vm874, %v849
        %883 = vst.msk [vmem:[%s301 + $0x40] sm:$0xff] %vm874, %v850
        %884 = vst.msk [vmem:[%s301 + $0x48] sm:$0xff] %vm874, %v851
        %885 = vst.msk [vmem:[%s301 + $0x50] sm:$0xff] %vm874, %v852
        %886 = vst.msk [vmem:[%s301 + $0x58] sm:$0xff] %vm874, %v853
        %887 = vst.msk [vmem:[%s301 + $0x60] sm:$0xff] %vm874, %v854
        %888 = vst.msk [vmem:[%s301 + $0x68] sm:$0xff] %vm874, %v855
        %889 = vst.msk [vmem:[%s301 + $0x70] sm:$0xff] %vm874, %v856
        %890 = vst.msk [vmem:[%s301 + $0x78] sm:$0xff] %vm874, %v857
        %891 = vst.msk [vmem:[%s301 + $0x80] sm:$0xff] %vm874, %v858
        %892 = vst.msk [vmem:[%s301 + $0x88] sm:$0xff] %vm874, %v859
        %893 = vst.msk [vmem:[%s301 + $0x90] sm:$0xff] %vm874, %v860
        %894 = vst.msk [vmem:[%s301 + $0x98] sm:$0xff] %vm874, %v861
        %895 = vst.msk [vmem:[%s301 + $0xa0] sm:$0xff] %vm874, %v862
        %896 = vst.msk [vmem:[%s301 + $0xa8] sm:$0xff] %vm874, %v863
        %897 = vst.msk [vmem:[%s301 + $0xb0] sm:$0xff] %vm874, %v864
        %898 = vst.msk [vmem:[%s301 + $0xb8] sm:$0xff] %vm874, %v865
        %899 = vst.msk [vmem:[%s301 + $0xc0] sm:$0xff] %vm874, %v866
        %900 = vst.msk [vmem:[%s301 + $0xc8] sm:$0xff] %vm874, %v867
        %901 = vst.msk [vmem:[%s301 + $0xd0] sm:$0xff] %vm874, %v868
        %902 = vst.msk [vmem:[%s301 + $0xd8] sm:$0xff] %vm874, %v869
        %903 = vst.msk [vmem:[%s301 + $0xe0] sm:$0xff] %vm874, %v870
        %904 = vst.msk [vmem:[%s301 + $0xe8] sm:$0xff] %vm874, %v871
        %905 = vst.msk [vmem:[%s301 + $0xf0] sm:$0xff] %vm874, %v872
        %906 = vst.msk [vmem:[%s301 + $0xf8] sm:$0xff] %vm874, %v873
        // Predicated region
        $region33: #{tpu_custom_call.1} parent=27 // pred_check
          %p907 = pneg %p304
        $region34: #{tpu_custom_call.1} parent=27 // pred_check_branch
          %909 = sbr.rel (%p907) target = $region36
        $region35: #{tpu_custom_call.1} parent=27 // pred_region
          %v910 = vld [vmem:[%s301] sm:$0xff]
          %v911 = vld [vmem:[%s301 + $0x8] sm:$0xff]
          %v912 = vld [vmem:[%s301 + $0x10] sm:$0xff]
          %v913 = vld [vmem:[%s301 + $0x18] sm:$0xff]
          %v914 = vld [vmem:[%s301 + $0x20] sm:$0xff]
          %v915 = vld [vmem:[%s301 + $0x28] sm:$0xff]
          %v916 = vld [vmem:[%s301 + $0x30] sm:$0xff]
          %v917 = vld [vmem:[%s301 + $0x38] sm:$0xff]
          %v918 = vld [vmem:[%s301 + $0x40] sm:$0xff]
          %v919 = vld [vmem:[%s301 + $0x48] sm:$0xff]
          %v920 = vld [vmem:[%s301 + $0x50] sm:$0xff]
          %v921 = vld [vmem:[%s301 + $0x58] sm:$0xff]
          %v922 = vld [vmem:[%s301 + $0x60] sm:$0xff]
          %v923 = vld [vmem:[%s301 + $0x68] sm:$0xff]
          %v924 = vld [vmem:[%s301 + $0x70] sm:$0xff]
          %v925 = vld [vmem:[%s301 + $0x78] sm:$0xff]
          %v926 = vld [vmem:[%s301 + $0x80] sm:$0xff]
          %v927 = vld [vmem:[%s301 + $0x88] sm:$0xff]
          %v928 = vld [vmem:[%s301 + $0x90] sm:$0xff]
          %v929 = vld [vmem:[%s301 + $0x98] sm:$0xff]
          %v930 = vld [vmem:[%s301 + $0xa0] sm:$0xff]
          %v931 = vld [vmem:[%s301 + $0xa8] sm:$0xff]
          %v932 = vld [vmem:[%s301 + $0xb0] sm:$0xff]
          %v933 = vld [vmem:[%s301 + $0xb8] sm:$0xff]
          %v934 = vld [vmem:[%s301 + $0xc0] sm:$0xff]
          %v935 = vld [vmem:[%s301 + $0xc8] sm:$0xff]
          %v936 = vld [vmem:[%s301 + $0xd0] sm:$0xff]
          %v937 = vld [vmem:[%s301 + $0xd8] sm:$0xff]
          %v938 = vld [vmem:[%s301 + $0xe0] sm:$0xff]
          %v939 = vld [vmem:[%s301 + $0xe8] sm:$0xff]
          %v940 = vld [vmem:[%s301 + $0xf0] sm:$0xff]
          %v941 = vld [vmem:[%s301 + $0xf8] sm:$0xff]
          %v942 = vsel %vm874, %v910, 0.0
          %v943 = vsel %vm874, %v911, 0.0
          %v944 = vadd.f32 %v942, %v943
          %v945 = vsel %vm874, %v912, 0.0
          %v946 = vadd.f32 %v944, %v945
          %v947 = vsel %vm874, %v913, 0.0
          %v948 = vadd.f32 %v946, %v947
          %v949 = vsel %vm874, %v914, 0.0
          %v950 = vadd.f32 %v948, %v949
          %v951 = vsel %vm874, %v915, 0.0
          %v952 = vadd.f32 %v950, %v951
          %v953 = vsel %vm874, %v916, 0.0
          %v954 = vadd.f32 %v952, %v953
          %v955 = vsel %vm874, %v917, 0.0
          %v956 = vadd.f32 %v954, %v955
          %v957 = vsel %vm874, %v918, 0.0
          %v958 = vadd.f32 %v956, %v957
          %v959 = vsel %vm874, %v919, 0.0
          %v960 = vadd.f32 %v958, %v959
          %v961 = vsel %vm874, %v920, 0.0
          %v962 = vadd.f32 %v960, %v961
          %v963 = vsel %vm874, %v921, 0.0
          %v964 = vadd.f32 %v962, %v963
          %v965 = vsel %vm874, %v922, 0.0
          %v966 = vadd.f32 %v964, %v965
          %v967 = vsel %vm874, %v923, 0.0
          %v968 = vadd.f32 %v966, %v967
          %v969 = vsel %vm874, %v924, 0.0
          %v970 = vadd.f32 %v968, %v969
          %v971 = vsel %vm874, %v925, 0.0
          %v972 = vadd.f32 %v970, %v971
          %v973 = vsel %vm874, %v926, 0.0
          %v974 = vadd.f32 %v972, %v973
          %v975 = vsel %vm874, %v927, 0.0
          %v976 = vadd.f32 %v974, %v975
          %v977 = vsel %vm874, %v928, 0.0
          %v978 = vadd.f32 %v976, %v977
          %v979 = vsel %vm874, %v929, 0.0
          %v980 = vadd.f32 %v978, %v979
          %v981 = vsel %vm874, %v930, 0.0
          %v982 = vadd.f32 %v980, %v981
          %v983 = vsel %vm874, %v931, 0.0
          %v984 = vadd.f32 %v982, %v983
          %v985 = vsel %vm874, %v932, 0.0
          %v986 = vadd.f32 %v984, %v985
          %v987 = vsel %vm874, %v933, 0.0
          %v988 = vadd.f32 %v986, %v987
          %v989 = vsel %vm874, %v934, 0.0
          %v990 = vadd.f32 %v988, %v989
          %v991 = vsel %vm874, %v935, 0.0
          %v992 = vadd.f32 %v990, %v991
          %v993 = vsel %vm874, %v936, 0.0
          %v994 = vadd.f32 %v992, %v993
          %v995 = vsel %vm874, %v937, 0.0
          %v996 = vadd.f32 %v994, %v995
          %v997 = vsel %vm874, %v938, 0.0
          %v998 = vadd.f32 %v996, %v997
          %v999 = vsel %vm874, %v939, 0.0
          %v1000 = vadd.f32 %v998, %v999
          %v1001 = vsel %vm874, %v940, 0.0
          %v1002 = vadd.f32 %v1000, %v1001
          %v1003 = vsel %vm874, %v941, 0.0
          %v1004 = vadd.f32 %v1002, %v1003
          %v1005 = vrot.slane %v1004, 4
          %v1006 = vadd.f32 %v1004, %v1005
          %v1007 = vrot.slane %v1006, 2
          %v1008 = vadd.f32 %v1006, %v1007
          %v1009 = vrot.slane %v1008, 1
          %v1010 = vadd.f32 %v1008, %v1009
          %v1011 = vmul.f32 %v910, %v910
          %v1012 = vmul.f32 %v911, %v911
          %v1013 = vmul.f32 %v912, %v912
          %v1014 = vmul.f32 %v913, %v913
          %v1015 = vmul.f32 %v914, %v914
          %v1016 = vmul.f32 %v915, %v915
          %v1017 = vmul.f32 %v916, %v916
          %v1018 = vmul.f32 %v917, %v917
          %v1019 = vmul.f32 %v918, %v918
          %v1020 = vmul.f32 %v919, %v919
          %v1021 = vmul.f32 %v920, %v920
          %v1022 = vmul.f32 %v921, %v921
          %v1023 = vmul.f32 %v922, %v922
          %v1024 = vmul.f32 %v923, %v923
          %v1025 = vmul.f32 %v924, %v924
          %v1026 = vmul.f32 %v925, %v925
          %v1027 = vmul.f32 %v926, %v926
          %v1028 = vmul.f32 %v927, %v927
          %v1029 = vmul.f32 %v928, %v928
          %v1030 = vmul.f32 %v929, %v929
          %v1031 = vmul.f32 %v930, %v930
          %v1032 = vmul.f32 %v931, %v931
          %v1033 = vmul.f32 %v932, %v932
          %v1034 = vmul.f32 %v933, %v933
          %v1035 = vmul.f32 %v934, %v934
          %v1036 = vmul.f32 %v935, %v935
          %v1037 = vmul.f32 %v936, %v936
          %v1038 = vmul.f32 %v937, %v937
          %v1039 = vmul.f32 %v938, %v938
          %v1040 = vmul.f32 %v939, %v939
          %v1041 = vmul.f32 %v940, %v940
          %v1042 = vmul.f32 %v941, %v941
          %v1043 = vsel %vm874, %v1011, 0.0
          %v1044 = vsel %vm874, %v1012, 0.0
          %v1045 = vadd.f32 %v1043, %v1044
          %v1046 = vsel %vm874, %v1013, 0.0
          %v1047 = vadd.f32 %v1045, %v1046
          %v1048 = vsel %vm874, %v1014, 0.0
          %v1049 = vadd.f32 %v1047, %v1048
          %v1050 = vsel %vm874, %v1015, 0.0
          %v1051 = vadd.f32 %v1049, %v1050
          %v1052 = vsel %vm874, %v1016, 0.0
          %v1053 = vadd.f32 %v1051, %v1052
          %v1054 = vsel %vm874, %v1017, 0.0
          %v1055 = vadd.f32 %v1053, %v1054
          %v1056 = vsel %vm874, %v1018, 0.0
          %v1057 = vadd.f32 %v1055, %v1056
          %v1058 = vsel %vm874, %v1019, 0.0
          %v1059 = vadd.f32 %v1057, %v1058
          %v1060 = vsel %vm874, %v1020, 0.0
          %v1061 = vadd.f32 %v1059, %v1060
          %v1062 = vsel %vm874, %v1021, 0.0
          %v1063 = vadd.f32 %v1061, %v1062
          %v1064 = vsel %vm874, %v1022, 0.0
          %v1065 = vadd.f32 %v1063, %v1064
          %v1066 = vsel %vm874, %v1023, 0.0
          %v1067 = vadd.f32 %v1065, %v1066
          %v1068 = vsel %vm874, %v1024, 0.0
          %v1069 = vadd.f32 %v1067, %v1068
          %v1070 = vsel %vm874, %v1025, 0.0
          %v1071 = vadd.f32 %v1069, %v1070
          %v1072 = vsel %vm874, %v1026, 0.0
          %v1073 = vadd.f32 %v1071, %v1072
          %v1074 = vsel %vm874, %v1027, 0.0
          %v1075 = vadd.f32 %v1073, %v1074
          %v1076 = vsel %vm874, %v1028, 0.0
          %v1077 = vadd.f32 %v1075, %v1076
          %v1078 = vsel %vm874, %v1029, 0.0
          %v1079 = vadd.f32 %v1077, %v1078
          %v1080 = vsel %vm874, %v1030, 0.0
          %v1081 = vadd.f32 %v1079, %v1080
          %v1082 = vsel %vm874, %v1031, 0.0
          %v1083 = vadd.f32 %v1081, %v1082
          %v1084 = vsel %vm874, %v1032, 0.0
          %v1085 = vadd.f32 %v1083, %v1084
          %v1086 = vsel %vm874, %v1033, 0.0
          %v1087 = vadd.f32 %v1085, %v1086
          %v1088 = vsel %vm874, %v1034, 0.0
          %v1089 = vadd.f32 %v1087, %v1088
          %v1090 = vsel %vm874, %v1035, 0.0
          %v1091 = vadd.f32 %v1089, %v1090
          %v1092 = vsel %vm874, %v1036, 0.0
          %v1093 = vadd.f32 %v1091, %v1092
          %v1094 = vsel %vm874, %v1037, 0.0
          %v1095 = vadd.f32 %v1093, %v1094
          %v1096 = vsel %vm874, %v1038, 0.0
          %v1097 = vadd.f32 %v1095, %v1096
          %v1098 = vsel %vm874, %v1039, 0.0
          %v1099 = vadd.f32 %v1097, %v1098
          %v1100 = vsel %vm874, %v1040, 0.0
          %v1101 = vadd.f32 %v1099, %v1100
          %v1102 = vsel %vm874, %v1041, 0.0
          %v1103 = vadd.f32 %v1101, %v1102
          %v1104 = vsel %vm874, %v1042, 0.0
          %v1105 = vadd.f32 %v1103, %v1104
          %v1106 = vrot.slane %v1105, 4
          %v1107 = vadd.f32 %v1105, %v1106
          %v1108 = vrot.slane %v1107, 2
          %v1109 = vadd.f32 %v1107, %v1108
          %v1110 = vrot.slane %v1109, 1
          %v1111 = vadd.f32 %v1109, %v1110
          %vm1112 = vcmask 516096
          %1113 = vst.msk [vmem:[%s266] sm:$0x1] %vm1112, %v1010
          %1114 = vst.msk [vmem:[%s272] sm:$0x1] %vm1112, %v1111
        $region36: #{tpu_custom_call.1} parent=27 // pred_fallthru
          _
        %s1115 = smul.u32 32, %s27
        %p1116 = scmp.lt.s32.totalorder %s1115, 63
        %s1117 = scalar_select %p1116, %s1115, 63
        %p1118 = scmp.lt.s32.totalorder %s28, 0
        %s1119 = scalar_select %p1118, %s28, 0
        %s1120 = sadd.s32 %s1119, %s1117
        %s1121 = smul.addr %s1120, 8
        %s1122 = scalar_lea.vmem %s2, %s1121
        %s1123 = sand.u32 %s135, 1
        %s1124 = scalar_lea.sflag [#allocation3], %s1123
        %s1125 = sand.u32 %s135, 1
        %s1126 = scalar_lea.vmem [#allocation2], %s1125
        %s1127 = sand.u32 %s163, 1
        %s1128 = scalar_lea.sflag [#allocation5], %s1127
        %s1129 = sand.u32 %s163, 1
        %s1130 = scalar_lea.vmem [#allocation4], %s1129
        // Predicated region
        $region37: #{tpu_custom_call.1} parent=27 // pred_check
          %p1131 = pneg %p117
        $region38: #{tpu_custom_call.1} parent=27 // pred_check_branch
          %1133 = sbr.rel (%p1131) target = $region40
        $region39: #{tpu_custom_call.1} parent=27 // pred_region
          %s1134 = smul.u32 32, %s27
        $region40: #{tpu_custom_call.1} parent=27 // pred_fallthru
          _
        // Predicated region
        $region41: #{tpu_custom_call.1} parent=27 // pred_check
          %p1135 = pneg %p145
        $region42: #{tpu_custom_call.1} parent=27 // pred_check_branch
          %1137 = sbr.rel (%p1135) target = $region44
        $region43: #{tpu_custom_call.1} parent=27 // pred_region
          %s1139 = ssub.s32 16, 16
          %1140 = vsyncadd %s1124, %s1139
          %s1141 = sadd.s32 %s28, %s27
          %s1142 = smul.addr %s1141, 16
          %s1143 = scalar_lea.hbm %s3, %s1142
          %s1145 = sshll.u32 %s1126, 4
          %s1146 = int_to_ptr.vmem [resolvable:$true] %s1145
          %1148 = dma.vmem_to_hbm [thread:$0]  %s1146, 16, %s1143, %s1124
        $region44: #{tpu_custom_call.1} parent=27 // pred_fallthru
          _
        // Predicated region
        $region45: #{tpu_custom_call.1} parent=27 // pred_check
          %p1149 = pneg %p173
        $region46: #{tpu_custom_call.1} parent=27 // pred_check_branch
          %1151 = sbr.rel (%p1149) target = $region48
        $region47: #{tpu_custom_call.1} parent=27 // pred_region
          %s1153 = ssub.s32 16, 16
          %1154 = vsyncadd %s1128, %s1153
          %s1155 = sadd.s32 %s28, %s27
          %s1156 = smul.addr %s1155, 16
          %s1157 = scalar_lea.hbm %s4, %s1156
          %s1159 = sshll.u32 %s1130, 4
          %s1160 = int_to_ptr.vmem [resolvable:$true] %s1159
          %1162 = dma.vmem_to_hbm [thread:$0]  %s1160, 16, %s1157, %s1128
        $region48: #{tpu_custom_call.1} parent=27 // pred_fallthru
          _
      $region28: #{tpu_custom_call.1} parent=5 // pred_fallthru
        _
      %p1163 = scmp.le.s32.totalorder 2, %s17
      // Predicated region
      $region49: #{tpu_custom_call.1} parent=5 // pred_check
        %p1164 = pneg %p1163
      $region50: #{tpu_custom_call.1} parent=5 // pred_check_branch
        %1166 = sbr.rel (%p1164) target = $region52
      $region51: #{tpu_custom_call.1} parent=5 // pred_region
        %s1167 = ssub.s32 %s17, 2
        // Predicated region
        $region53: #{tpu_custom_call.1} parent=51 // pred_check
          %p1168 = pneg %p123
        $region54: #{tpu_custom_call.1} parent=51 // pred_check_branch
          %1170 = sbr.rel (%p1168) target = $region56
        $region55: #{tpu_custom_call.1} parent=51 // pred_region
          %s1171 = smul.u32 32, %s30
          %p1172 = scmp.lt.s32.totalorder %s1171, 63
          %s1173 = scalar_select %p1172, %s1171, 63
          %p1174 = scmp.lt.s32.totalorder %s31, 0
          %s1175 = scalar_select %p1174, %s31, 0
          %s1176 = sadd.s32 %s1175, %s1173
          %s1177 = smul.addr %s1176, 8
          %s1178 = scalar_lea.vmem %s2, %s1177
        $region56: #{tpu_custom_call.1} parent=51 // pred_fallthru
          _
        // Predicated region
        $region57: #{tpu_custom_call.1} parent=51 // pred_check
          %p1179 = pneg %p151
        $region58: #{tpu_custom_call.1} parent=51 // pred_check_branch
          %1181 = sbr.rel (%p1179) target = $region60
        $region59: #{tpu_custom_call.1} parent=51 // pred_region
          %s1182 = sand.u32 %s136, 1
          %s1183 = scalar_lea.sflag [#allocation3], %s1182
          %s1184 = sand.u32 %s136, 1
          %s1185 = scalar_lea.vmem [#allocation2], %s1184
          %1186 = dma.done %s1183, 16
        $region60: #{tpu_custom_call.1} parent=51 // pred_fallthru
          _
        // Predicated region
        $region61: #{tpu_custom_call.1} parent=51 // pred_check
          %p1187 = pneg %p179
        $region62: #{tpu_custom_call.1} parent=51 // pred_check_branch
          %1189 = sbr.rel (%p1187) target = $region64
        $region63: #{tpu_custom_call.1} parent=51 // pred_region
          %s1190 = sand.u32 %s164, 1
          %s1191 = scalar_lea.sflag [#allocation5], %s1190
          %s1192 = sand.u32 %s164, 1
          %s1193 = scalar_lea.vmem [#allocation4], %s1192
          %1194 = dma.done %s1191, 16
        $region64: #{tpu_custom_call.1} parent=51 // pred_fallthru
          _
      $region52: #{tpu_custom_call.1} parent=5 // pred_fallthru
        _
    $region6: #{tpu_custom_call.1} parent=1 // loop_footer
      %s21 = sadd.s32 1, %s17
    $region7: #{tpu_custom_call.1} parent=1 // loop_footer_branch
      %16 = sbr.rel target = $region3
    $region8: #{tpu_custom_call.1} parent=1 // loop_exit
      _
    %1195 = vsyncpa [#allocation3], 1
    %s1196 = scalar_lea.sflag [#allocation3], 1
    %1197 = vsyncpa %s1196, 1
    %1198 = vsyncpa [#allocation5], 1
    %s1199 = scalar_lea.sflag [#allocation5], 1
    %1200 = vsyncpa %s1199, 1

</llo_original>
